<compile_context>
chip_gen: v6e
topology: v6e:2x2x1
jax: 0.10.0
libtpu: 0.0.40
codegen_flags: <defaults>
</compile_context>

<pallas_src>
import jax
import jax.numpy as jnp
from jax.experimental import pallas as pl
from jax.experimental.pallas import tpu as pltpu


def _conv1x1_bn_relu_kernel(x_ref, w_ref, bias_ref, o_ref):
    # x_ref:    (Cin, T)          HW-tile of one batch element (channels-first)
    # w_ref:    (tile_cout, Cin)  BN-scale-folded weight tile (resident per cout-tile)
    # bias_ref: (tile_cout, 1)    folded BN bias (f32, includes conv bias)
    # o_ref:    (tile_cout, T)    lane-dense output tile
    acc = jnp.dot(w_ref[...], x_ref[...], preferred_element_type=jnp.float32)
    o_ref[...] = jnp.maximum(acc + bias_ref[...], 0.0).astype(o_ref.dtype)


def _tpu_vmem_bytes():
    try:
        return int(pltpu.get_tpu_info().vmem_capacity_bytes)
    except Exception:
        return 64 * 1024 * 1024          # conservative fallback (v7x-sized)


def _pick_tiles(n, cin, cout, hw, itemsize, vmem_budget_bytes, min_grid_steps=4):
    """Choose (tile_cout, tile_hw) under a VMEM budget.

    Accounts for the double-buffered resident weight/bias, keeps the HW tile
    lane-dense (multiple of 128 or full extent), and caps tile_hw so the grid
    has at least `min_grid_steps` steps (pipelining + megacore sharding).
    """
    # --- Cout tile: bound the (double-buffered) weight footprint (<= 1/4 budget) ---
    w_budget = max(vmem_budget_bytes // 4, 64 * 1024)
    per_row = 2 * cin * itemsize                      # one weight row, double-buffered
    max_rows = max(8, w_budget // per_row)
    tile_cout = cout if cout <= max_rows else (max_rows // 8) * 8   # sublane-aligned
    cout_tiles = pl.cdiv(cout, tile_cout)

    # --- HW tile: biggest lane-dense tile that fits the remaining budget ---
    resident = 2 * tile_cout * cin * itemsize + 2 * tile_cout * 4   # weight + f32 bias
    budget = max(vmem_budget_bytes - resident, 256 * 1024)
    per_col = 2 * (cin + tile_cout) * itemsize        # x tile + out tile, double-buffered
    max_cols = max(128, budget // per_col)

    if hw <= 128:
        return tile_cout, cout_tiles, hw              # must take the full (tiny) extent
    if hw <= max_cols:
        tile_hw = hw                                  # single full-extent tile fits
    else:
        tile_hw = (max_cols // 128) * 128             # lane-dense, unmasked stores

    # --- Ensure enough grid steps for double-buffering / both TCs on v7x ---
    steps = n * cout_tiles * pl.cdiv(hw, tile_hw)
    if steps < min_grid_steps:
        want_hw_tiles = -(-min_grid_steps // (n * cout_tiles))      # ceil
        cap = max(128, (hw // want_hw_tiles // 128) * 128)
        tile_hw = min(tile_hw, cap)
    return tile_cout, cout_tiles, tile_hw


def conv1x1_bn_relu(x_nchw, weight, conv_bias, gamma, beta,
                    running_mean, running_var, eps=1e-5,
                    compute_dtype=None, tile_hw=None, tile_cout=None,
                    vmem_budget_bytes=None):
    """x_nchw: (N, Cin, H, W).  weight: (Cout, Cin) or Conv2d-style (Cout, Cin, 1, 1).

    compute_dtype: optional dtype (e.g. jnp.bfloat16) for x / folded-weight /
    output HBM traffic; accumulation and the BN/ReLU epilogue stay f32.
    """
    N, Cin, H, W = x_nchw.shape
    if weight.ndim == 4:                              # accept raw Conv2d weight layout
        weight = weight.reshape(weight.shape[0], weight.shape[1])
    Cout = weight.shape[0]
    HW = H * W

    if compute_dtype is None:
        compute_dtype = x_nchw.dtype
    compute_dtype = jnp.dtype(compute_dtype)
    itemsize = compute_dtype.itemsize

    # Fold BN (eval mode) into the weight rows and a per-channel bias, in f32.
    inv_std = 1.0 / jnp.sqrt(running_var.astype(jnp.float32) + eps)
    g = gamma.astype(jnp.float32) * inv_std                          # (Cout,)
    w_fold = (weight.astype(jnp.float32) * g[:, None]).astype(compute_dtype)
    if conv_bias is None:                                            # Conv2d(bias=False)
        conv_bias = jnp.zeros((Cout,), jnp.float32)
    bias = ((conv_bias.astype(jnp.float32) - running_mean.astype(jnp.float32)) * g
            + beta.astype(jnp.float32)).reshape(Cout, 1)             # stays f32

    # Free reshape (no transpose): NCHW -> (N, Cin, HW).
    x_flat = x_nchw.reshape(N, Cin, HW).astype(compute_dtype)

    # Generation-aware VMEM budget / limit.
    phys_vmem = _tpu_vmem_bytes()
    if vmem_budget_bytes is None:
        vmem_budget_bytes = phys_vmem // 3
    vmem_limit = min(phys_vmem * 3 // 4, 96 * 1024 * 1024)

    auto_tc, _, auto_thw = _pick_tiles(N, Cin, Cout, HW, itemsize, vmem_budget_bytes)
    if tile_cout is None:
        tile_cout = auto_tc
    if tile_hw is None:
        tile_hw = auto_thw
    cout_tiles = pl.cdiv(Cout, tile_cout)
    hw_tiles = pl.cdiv(HW, tile_hw)                   # partial last tile handled by Pallas

    out_flat = pl.pallas_call(
        _conv1x1_bn_relu_kernel,
        out_shape=jax.ShapeDtypeStruct((N, Cout, HW), compute_dtype),
        grid_spec=pltpu.PrefetchScalarGridSpec(
            num_scalar_prefetch=0,
            grid=(N, cout_tiles, hw_tiles),
            in_specs=[
                # x tile: lane axis = HW (dense); batch dim squeezed out.
                pl.BlockSpec((None, Cin, tile_hw), lambda n, c, t: (n, 0, t)),
                # Folded weight / bias: constant over (n, t) -> resident per cout-tile.
                pl.BlockSpec((tile_cout, Cin), lambda n, c, t: (c, 0)),
                pl.BlockSpec((tile_cout, 1), lambda n, c, t: (c, 0)),
            ],
            out_specs=pl.BlockSpec((None, tile_cout, tile_hw),
                                   lambda n, c, t: (n, c, t)),
        ),
        compiler_params=pltpu.CompilerParams(
            # No reduction axes: every grid axis is independent -> megacore sharding.
            dimension_semantics=("parallel", "parallel", "parallel"),
            vmem_limit_bytes=vmem_limit,
        ),
    )(x_flat, w_fold, bias)

    # Free reshape back: (N, Cout, HW) -> NCHW.
    return out_flat.reshape(N, Cout, H, W)


def _reference(x, weight, conv_bias, gamma, beta, mean, var, eps=1e-5):
    y = jnp.einsum("nchw,oc->nohw", x, weight) + conv_bias[None, :, None, None]
    y = (y - mean[None, :, None, None]) / jnp.sqrt(var[None, :, None, None] + eps)
    y = y * gamma[None, :, None, None] + beta[None, :, None, None]
    return jnp.maximum(y, 0.0)


if __name__ == "__main__":
    key = jax.random.PRNGKey(0)
    k_x, k_w, k_b, k_g, k_be, k_m, k_v, k_x2 = jax.random.split(key, 8)

    N, Cin, H, W = 2, 4, 16, 16
    Cout = 8

    x = jax.random.normal(k_x, (N, Cin, H, W), dtype=jnp.float32)

    # Parameters (shapes match nn.Conv2d(Cin, Cout, 1) and nn.BatchNorm2d(Cout)).
    weight = jax.random.normal(k_w, (Cout, Cin), dtype=jnp.float32) * 0.1
    conv_bias = jax.random.normal(k_b, (Cout,), dtype=jnp.float32) * 0.1
    gamma = 1.0 + 0.1 * jax.random.normal(k_g, (Cout,), dtype=jnp.float32)
    beta = 0.1 * jax.random.normal(k_be, (Cout,), dtype=jnp.float32)
    running_mean = 0.1 * jax.random.normal(k_m, (Cout,), dtype=jnp.float32)
    running_var = jax.random.uniform(k_v, (Cout,), dtype=jnp.float32,
                                     minval=0.5, maxval=1.5)

    ref = _reference(x, weight, conv_bias, gamma, beta, running_mean, running_var)

    # --- Test 1: default (auto) tiling, f32 I/O; grid gets >= 4 steps ---
    out = conv1x1_bn_relu(x, weight, conv_bias, gamma, beta,
                          running_mean, running_var)
    out = jax.block_until_ready(out)
    assert out.shape == (N, Cout, H, W)
    assert jnp.max(jnp.abs(out - ref)) < 1e-4

    # --- Test 2: HW not divisible by tile_hw -> exercises the partial-last-tile path ---
    H2, W2 = 20, 16                                   # HW = 320, tile_hw = 256 -> cdiv grid
    x2 = jax.random.normal(k_x2, (N, Cin, H2, W2), dtype=jnp.float32)
    out2 = conv1x1_bn_relu(x2, weight, conv_bias, gamma, beta,
                           running_mean, running_var, tile_hw=256)
    out2 = jax.block_until_ready(out2)
    ref2 = _reference(x2, weight, conv_bias, gamma, beta, running_mean, running_var)
    assert out2.shape == (N, Cout, H2, W2)
    assert jnp.max(jnp.abs(out2 - ref2)) < 1e-4

    # --- Test 3: bf16 compute/IO path (f32 accumulation + epilogue), looser tol ---
    out3 = conv1x1_bn_relu(x, weight, conv_bias, gamma, beta,
                           running_mean, running_var, compute_dtype=jnp.bfloat16)
    out3 = jax.block_until_ready(out3)
    assert out3.shape == (N, Cout, H, W)
    assert out3.dtype == jnp.bfloat16
    assert jnp.max(jnp.abs(out3.astype(jnp.float32) - ref)) < 5e-2

    print("KERNEL_OK")
</pallas_src>

<mosaic_0001>
module attributes {stable_mosaic.version = 11 : i64} {
  func.func @_conv1x1_bn_relu_kernel(%arg0: i32, %arg1: i32, %arg2: i32, %arg3: memref<1x4x128xf32, #tpu.memory_space<vmem>>, %arg4: memref<8x4xf32, #tpu.memory_space<vmem>>, %arg5: memref<8x1xf32, #tpu.memory_space<vmem>>, %arg6: memref<1x8x128xf32, #tpu.memory_space<vmem>>) attributes {dimension_semantics = [#tpu.dimension_semantics<parallel>, #tpu.dimension_semantics<parallel>, #tpu.dimension_semantics<parallel>], iteration_bounds = array<i64: 2, 1, 2>, scalar_prefetch = 0 : i64, scratch_operands = 0 : i64, tpu.core_type = #tpu.core_type<tc>, window_params = [{transform_indices = @transform_0, window_bounds = array<i64: 1, 4, 128>}, {transform_indices = @transform_1, window_bounds = array<i64: 8, 4>}, {transform_indices = @transform_2, window_bounds = array<i64: 8, 1>}, {transform_indices = @transform_3, window_bounds = array<i64: 1, 8, 128>}]} {
    %c0 = arith.constant 0 : index
    %c0_0 = arith.constant 0 : index
    %0 = vector.load %arg4[%c0, %c0_0] : memref<8x4xf32, #tpu.memory_space<vmem>>, vector<8x4xf32>
    %c0_1 = arith.constant 0 : index
    %c0_2 = arith.constant 0 : index
    %c0_3 = arith.constant 0 : index
    %1 = vector.load %arg3[%c0_1, %c0_2, %c0_3] : memref<1x4x128xf32, #tpu.memory_space<vmem>>, vector<1x4x128xf32>
    %2 = vector.shape_cast %1 : vector<1x4x128xf32> to vector<4x128xf32>
    %cst = arith.constant dense<0.000000e+00> : vector<8x128xf32>
    %3 = tpu.matmul %0, %2, %cst {dimension_numbers = #tpu.dot_dimension_numbers<[1], [0], [0], [1], [0, 0, 1, 1], [], []>} : vector<8x4xf32>, vector<4x128xf32>, vector<8x128xf32> -> vector<8x128xf32>
    %c0_4 = arith.constant 0 : index
    %c0_5 = arith.constant 0 : index
    %4 = vector.load %arg5[%c0_4, %c0_5] : memref<8x1xf32, #tpu.memory_space<vmem>>, vector<8x1xf32>
    %5 = vector.broadcast %4 : vector<8x1xf32> to vector<8x128xf32>
    %6 = arith.addf %3, %5 : vector<8x128xf32>
    %cst_6 = arith.constant 0.000000e+00 : f32
    %7 = vector.broadcast %cst_6 : f32 to vector<8x128xf32>
    %8 = arith.maximumf %6, %7 : vector<8x128xf32>
    %c0_7 = arith.constant 0 : index
    %c0_8 = arith.constant 0 : index
    %c0_9 = arith.constant 0 : index
    %9 = vector.load %arg6[%c0_7, %c0_8, %c0_9] : memref<1x8x128xf32, #tpu.memory_space<vmem>>, vector<1x8x128xf32>
    %10 = vector.shape_cast %9 : vector<1x8x128xf32> to vector<8x128xf32>
    %11 = vector.shape_cast %8 : vector<8x128xf32> to vector<1x8x128xf32>
    tpu.vector_store %arg6[%c0_7, %c0_8, %c0_9], %11 {strides = array<i32>} : memref<1x8x128xf32, #tpu.memory_space<vmem>>, vector<1x8x128xf32>,
    return
  }
  func.func @transform_0(%arg0: i32, %arg1: i32, %arg2: i32) -> (i32, i32, i32) {
    %c0_i32 = arith.constant 0 : i32
    %c0_i32_0 = arith.constant 0 : i32
    return %arg0, %c0_i32, %arg2 : i32, i32, i32
  }
  func.func @transform_1(%arg0: i32, %arg1: i32, %arg2: i32) -> (i32, i32) {
    %c0_i32 = arith.constant 0 : i32
    %c0_i32_0 = arith.constant 0 : i32
    return %arg1, %c0_i32 : i32, i32
  }
  func.func @transform_2(%arg0: i32, %arg1: i32, %arg2: i32) -> (i32, i32) {
    %c0_i32 = arith.constant 0 : i32
    %c0_i32_0 = arith.constant 0 : i32
    return %arg1, %c0_i32 : i32, i32
  }
  func.func @transform_3(%arg0: i32, %arg1: i32, %arg2: i32) -> (i32, i32, i32) {
    %c0_i32 = arith.constant 0 : i32
    return %arg0, %arg1, %arg2 : i32, i32, i32
  }
}

</mosaic_0001>

<llo_original>
// kernel: tpu_custom_call.1
$region0: #{tpu_custom_call.1}
  #allocation0 [shape = 'u32[]', space=smem, size = 0x4, offset = 0x4, fixed_abs, tag = 'smem constant byte address 0x4 - core index']
  #allocation1 [shape = 'u32[144,128]{1,0:T(1,128)}', space=vmem, size = 0x12000, scoped, tag = 'internal scratch']
  %s0 = inlined_call_operand.vmem [shape: f32[2,4,256], index: 0, kind: input, shape index: {}]
  %s1 = inlined_call_operand.vmem [shape: f32[8,4], index: 1, kind: input, shape index: {}]
  %s2 = inlined_call_operand.vmem [shape: f32[8,1], index: 2, kind: input, shape index: {}]
  %s3 = inlined_call_operand.hbm [shape: f32[2,8,256], index: 3, kind: output, shape index: {}]
  %s4 = sld [smem:[#allocation0]]
  $region45: #{tpu_custom_call.1} parent=0
    _
  %s6 = ssub.s32 1, %s4
  %s7 = scalar_select 0, %s6, %s4
  $region1: #{tpu_custom_call.1} parent=0
    #allocation2 [shape = 'u8[8192]{0}', space=vmem, size = 0x2000, scoped, tag = 'output window, operand 0']
    #allocation3 [shape = 's32[2]{0}', space=sflag, size = 0x8, scoped, tag = 'scoped memory for tpu_custom_call.1']
    %8 = vsyncpa [#allocation3], 0
    %s9 = scalar_lea.sflag [#allocation3], 1
    %10 = vsyncpa %s9, 0
    loop: start=0, step=1, limit=6
    $region2: #{tpu_custom_call.1} parent=1 // loop_pre_header
      _
    $region3: #{tpu_custom_call.1} parent=1 // loop_header
      %s12 = sphi 0, %s16
      %p13 = scmp.ge.s32.totalorder %s12, 6
      %s19 = sphi 0, %s38
      %s20 = sphi 0, %s34
      %s21 = sphi 0, %s30
      %s22 = sphi 0, %s19
      %s23 = sphi 0, %s20
      %s24 = sphi 0, %s21
      %s25 = sphi 0, %s22
      %s26 = sphi 0, %s23
      %s27 = sphi 0, %s24
      %s43 = sphi 0, %s45
      %s46 = sphi 0, %s43
      %s47 = sphi 0, %s46
      %s63 = sphi 0, %s47
      %s69 = sphi 0, %s71
      %s72 = sphi 0, %s69
      %s73 = sphi 0, %s72
      %s89 = sphi 0, %s73
      %s95 = sphi 0, %s97
      %s98 = sphi 0, %s95
      %s99 = sphi 0, %s98
      %s115 = sphi 0, %s99
      %s125 = sphi 0, %s127
      %s128 = sphi 0, %s125
      %s129 = sphi 0, %s128
      %s145 = sphi 0, %s129
    $region4: #{tpu_custom_call.1} parent=1 // loop_header_branch
      %15 = sbr.rel (%p13) target = $region8
    $region5: #{tpu_custom_call.1} parent=1 // loop_body
      %s17 = ssub.s32 %s12, 1
      %s18 = ssub.s32 %s12, 2
      %s28 = sadd.s32 1, %s21
      %p29 = scmp.ge.s32.totalorder %s28, 2
      %s30 = scalar_select %p29, 0, %s28
      %s31 = sadd.s32 1, %s20
      %s32 = scalar_select %p29, %s31, %s20
      %p33 = scmp.ge.s32.totalorder %s32, 1
      %s34 = scalar_select %p33, 0, %s32
      %s35 = sadd.s32 1, %s19
      %s36 = scalar_select %p33, %s35, %s19
      %p37 = scmp.ge.s32.totalorder %s36, 2
      %s38 = scalar_select %p37, 0, %s36
      %s39 = ssub.s32 %s19, %s38
      %s40 = ssub.s32 %s21, %s30
      %s41 = sor.u32 %s39, %s40
      %p42 = scmp.eq.s32.totalorder %s41, 0
      %s44 = sadd.s32 %s43, 1
      %s45 = scalar_select %p42, %s43, %s44
      %p48 = pneg %p42
      %p49 = scmp.eq.s32.totalorder %s12, 3
      %p50 = por %p48, %p49
      %p51 = scmp.ne.s32.totalorder %s43, %s46
      %p52 = scmp.eq.s32.totalorder %s12, 0
      %p53 = por %p51, %p52
      %p54 = scmp.ne.s32.totalorder %s43, %s46
      %p55 = scmp.eq.s32.totalorder %s17, 3
      %p56 = por %p54, %p55
      %p57 = scmp.ne.s32.totalorder %s46, %s47
      %p58 = scmp.eq.s32.totalorder %s17, 0
      %p59 = por %p57, %p58
      %p60 = scmp.ne.s32.totalorder %s46, %s47
      %p61 = scmp.eq.s32.totalorder %s18, 3
      %p62 = por %p60, %p61
      %p64 = scmp.ne.s32.totalorder %s47, %s63
      %p65 = scmp.eq.s32.totalorder %s18, 0
      %p66 = por %p64, %p65
      %s67 = ssub.s32 %s20, %s34
      %p68 = scmp.eq.s32.totalorder %s67, 0
      %s70 = sadd.s32 %s69, 1
      %s71 = scalar_select %p68, %s69, %s70
      %p74 = pneg %p68
      %p75 = scmp.eq.s32.totalorder %s12, 3
      %p76 = por %p74, %p75
      %p77 = scmp.ne.s32.totalorder %s69, %s72
      %p78 = scmp.eq.s32.totalorder %s12, 0
      %p79 = por %p77, %p78
      %p80 = scmp.ne.s32.totalorder %s69, %s72
      %p81 = scmp.eq.s32.totalorder %s17, 3
      %p82 = por %p80, %p81
      %p83 = scmp.ne.s32.totalorder %s72, %s73
      %p84 = scmp.eq.s32.totalorder %s17, 0
      %p85 = por %p83, %p84
      %p86 = scmp.ne.s32.totalorder %s72, %s73
      %p87 = scmp.eq.s32.totalorder %s18, 3
      %p88 = por %p86, %p87
      %p90 = scmp.ne.s32.totalorder %s73, %s89
      %p91 = scmp.eq.s32.totalorder %s18, 0
      %p92 = por %p90, %p91
      %s93 = ssub.s32 %s20, %s34
      %p94 = scmp.eq.s32.totalorder %s93, 0
      %s96 = sadd.s32 %s95, 1
      %s97 = scalar_select %p94, %s95, %s96
      %p100 = pneg %p94
      %p101 = scmp.eq.s32.totalorder %s12, 3
      %p102 = por %p100, %p101
      %p103 = scmp.ne.s32.totalorder %s95, %s98
      %p104 = scmp.eq.s32.totalorder %s12, 0
      %p105 = por %p103, %p104
      %p106 = scmp.ne.s32.totalorder %s95, %s98
      %p107 = scmp.eq.s32.totalorder %s17, 3
      %p108 = por %p106, %p107
      %p109 = scmp.ne.s32.totalorder %s98, %s99
      %p110 = scmp.eq.s32.totalorder %s17, 0
      %p111 = por %p109, %p110
      %p112 = scmp.ne.s32.totalorder %s98, %s99
      %p113 = scmp.eq.s32.totalorder %s18, 3
      %p114 = por %p112, %p113
      %p116 = scmp.ne.s32.totalorder %s99, %s115
      %p117 = scmp.eq.s32.totalorder %s18, 0
      %p118 = por %p116, %p117
      %s119 = ssub.s32 %s19, %s38
      %s120 = ssub.s32 %s20, %s34
      %s121 = sor.u32 %s119, %s120
      %s122 = ssub.s32 %s21, %s30
      %s123 = sor.u32 %s121, %s122
      %p124 = scmp.eq.s32.totalorder %s123, 0
      %s126 = sadd.s32 %s125, 1
      %s127 = scalar_select %p124, %s125, %s126
      %p130 = pneg %p124
      %p131 = scmp.eq.s32.totalorder %s12, 3
      %p132 = por %p130, %p131
      %p133 = scmp.ne.s32.totalorder %s125, %s128
      %p134 = scmp.eq.s32.totalorder %s12, 0
      %p135 = por %p133, %p134
      %p136 = scmp.ne.s32.totalorder %s125, %s128
      %p137 = scmp.eq.s32.totalorder %s17, 3
      %p138 = por %p136, %p137
      %p139 = scmp.ne.s32.totalorder %s128, %s129
      %p140 = scmp.eq.s32.totalorder %s17, 0
      %p141 = por %p139, %p140
      %p142 = scmp.ne.s32.totalorder %s128, %s129
      %p143 = scmp.eq.s32.totalorder %s18, 3
      %p144 = por %p142, %p143
      %p146 = scmp.ne.s32.totalorder %s129, %s145
      %p147 = scmp.eq.s32.totalorder %s18, 0
      %p148 = por %p146, %p147
      %p149 = scmp.le.s32.totalorder 1, %s12
      %p150 = scmp.lt.s32.totalorder %s12, 5
      %p151 = pnand %p149, %p150
      %p152 = pneg %p151
      // Predicated region
      $region9: #{tpu_custom_call.1} parent=5 // pred_check
        _
      $region10: #{tpu_custom_call.1} parent=5 // pred_check_branch
        %154 = sbr.rel (%p151) target = $region12
      $region11: #{tpu_custom_call.1} parent=5 // pred_region
        %s155 = ssub.s32 %s12, 1
        // Predicated region
        $region13: #{tpu_custom_call.1} parent=11 // pred_check
          %p156 = pneg %p85
        $region14: #{tpu_custom_call.1} parent=11 // pred_check_branch
          %158 = sbr.rel (%p156) target = $region16
        $region15: #{tpu_custom_call.1} parent=11 // pred_region
          %p159 = scmp.lt.s32.totalorder %s23, 0
          %s160 = scalar_select %p159, %s23, 0
          %s161 = smul.addr %s160, 8
          %s162 = scalar_lea.vmem %s1, %s161
        $region16: #{tpu_custom_call.1} parent=11 // pred_fallthru
          _
        // Predicated region
        $region17: #{tpu_custom_call.1} parent=11 // pred_check
          %p163 = pneg %p111
        $region18: #{tpu_custom_call.1} parent=11 // pred_check_branch
          %165 = sbr.rel (%p163) target = $region20
        $region19: #{tpu_custom_call.1} parent=11 // pred_region
          %p166 = scmp.lt.s32.totalorder %s23, 0
          %s167 = scalar_select %p166, %s23, 0
          %s168 = smul.addr %s167, 8
          %s169 = scalar_lea.vmem %s2, %s168
        $region20: #{tpu_custom_call.1} parent=11 // pred_fallthru
          _
      $region12: #{tpu_custom_call.1} parent=5 // pred_fallthru
        _
      %p170 = scmp.lt.s32.totalorder %s12, 4
      // Predicated region
      $region21: #{tpu_custom_call.1} parent=5 // pred_check
        %p171 = pneg %p170
      $region22: #{tpu_custom_call.1} parent=5 // pred_check_branch
        %173 = sbr.rel (%p171) target = $region24
      $region23: #{tpu_custom_call.1} parent=5 // pred_region
        // Predicated region
        $region25: #{tpu_custom_call.1} parent=23 // pred_check
          %p174 = pneg %p53
        $region26: #{tpu_custom_call.1} parent=23 // pred_check_branch
          %176 = sbr.rel (%p174) target = $region28
        $region27: #{tpu_custom_call.1} parent=23 // pred_region
          %p177 = scmp.lt.s32.totalorder %s19, 1
          %s178 = scalar_select %p177, %s19, 1
          %p179 = scmp.lt.s32.totalorder %s21, 1
          %s180 = scalar_select %p179, %s21, 1
          %s181 = smul.addr %s178, 2
          %s182 = sadd.s32 %s180, %s181
          %s183 = smul.addr %s182, 4
          %s184 = scalar_lea.vmem %s0, %s183
        $region28: #{tpu_custom_call.1} parent=23 // pred_fallthru
          _
      $region24: #{tpu_custom_call.1} parent=5 // pred_fallthru
        _
      %p185 = scmp.le.s32.totalorder 1, %s12
      %p186 = scmp.lt.s32.totalorder %s12, 5
      %p187 = pnand %p185, %p186
      %p188 = pneg %p187
      // Predicated region
      $region29: #{tpu_custom_call.1} parent=5 // pred_check
        _
      $region30: #{tpu_custom_call.1} parent=5 // pred_check_branch
        %190 = sbr.rel (%p187) target = $region32
      $region31: #{tpu_custom_call.1} parent=5 // pred_region
        %s191 = ssub.s32 %s12, 1
        %p192 = scmp.lt.s32.totalorder %s22, 1
        %s193 = scalar_select %p192, %s22, 1
        %p194 = scmp.lt.s32.totalorder %s24, 1
        %s195 = scalar_select %p194, %s24, 1
        %s196 = smul.addr %s193, 2
        %s197 = sadd.s32 %s195, %s196
        %s198 = smul.addr %s197, 4
        %s199 = scalar_lea.vmem %s0, %s198
        %p200 = pneg %p59
        %p201 = pneg %p56
        %p202 = scmp.lt.s32.totalorder %s23, 0
        %s203 = scalar_select %p202, %s23, 0
        %s204 = smul.addr %s203, 8
        %s205 = scalar_lea.vmem %s1, %s204
        %p206 = pneg %p85
        %p207 = pneg %p82
        %p208 = scmp.lt.s32.totalorder %s23, 0
        %s209 = scalar_select %p208, %s23, 0
        %s210 = smul.addr %s209, 8
        %s211 = scalar_lea.vmem %s2, %s210
        %p212 = pneg %p111
        %p213 = pneg %p108
        %p214 = pneg %p141
        %p215 = pneg %p138
        %s216 = sand.u32 %s128, 1
        %s217 = scalar_lea.sflag [#allocation3], %s216
        %s218 = sand.u32 %s128, 1
        %s219 = smul.addr %s218, 8
        %s220 = scalar_lea.vmem [#allocation2], %s219
        %p221 = scmp.lt.s32.totalorder %s22, 1
        %s222 = scalar_select %p221, %s22, 1
        %p223 = scmp.lt.s32.totalorder %s24, 1
        %s224 = scalar_select %p223, %s24, 1
        %s225 = smul.addr %s222, 2
        %s226 = sadd.s32 %s224, %s225
        %s227 = smul.addr %s226, 4
        %s228 = scalar_lea.vmem %s0, %s227
        %p229 = scmp.lt.s32.totalorder %s23, 0
        %s230 = scalar_select %p229, %s23, 0
        %s231 = smul.addr %s230, 8
        %s232 = scalar_lea.vmem %s1, %s231
        %p233 = scmp.lt.s32.totalorder %s23, 0
        %s234 = scalar_select %p233, %s23, 0
        %s235 = smul.addr %s234, 8
        %s236 = scalar_lea.vmem %s2, %s235
        %v237 = vld [vmem:[%s232] sm:$0xff]
        %v238 = vld [vmem:[%s228] sm:$0xf]
        %v239 = vld [vmem:[%s236] sm:$0xff]
        %241 = vset.pattern.permute.xlu0 0
        %242 = vperm.xlu0 %241, %v239
        %v243 = vpop.permute.xlu0 %242
        %vm245 = vcmask 31744
        %v247 = vsel %vm245, %v237, 0
        %vm249 = vcmask 1043456
        %v251 = vsel %vm249, %v238, 0
        %253 = vmatprep.subr.mxu0 0.0
        %254 = vmatpush1.msra.mxu0 0.0
        %255 = vmatprep.subr.mxu0 0.0
        %256 = vmatpush1.msra.mxu0 0.0
        %257 = vmatprep.subr.mxu0 0.0
        %258 = vmatpush1.msra.mxu0 0.0
        %259 = vmatprep.subr.mxu0 0.0
        %260 = vmatpush1.msra.mxu0 0.0
        %261 = vmatprep.subr.mxu0 0.0
        %262 = vmatpush1.msra.mxu0 0.0
        %263 = vmatprep.subr.mxu0 0.0
        %264 = vmatpush1.msra.mxu0 0.0
        %265 = vmatprep.subr.mxu0 0.0
        %266 = vmatpush1.msra.mxu0 0.0
        %267 = vmatprep.subr.mxu0 0.0
        %268 = vmatpush1.msra.mxu0 0.0
        %269 = vmatprep.subr.mxu0 0.0
        %270 = vmatpush1.msra.mxu0 0.0
        %271 = vmatprep.subr.mxu0 0.0
        %272 = vmatpush1.msra.mxu0 0.0
        %273 = vmatprep.subr.mxu0 0.0
        %274 = vmatpush1.msra.mxu0 0.0
        %275 = vmatprep.subr.mxu0 0.0
        %276 = vmatpush1.msra.mxu0 0.0
        %277 = vmatprep.subr.mxu0 0.0
        %278 = vmatpush1.msra.mxu0 0.0
        %279 = vmatprep.subr.mxu0 0.0
        %280 = vmatpush1.msra.mxu0 0.0
        %281 = vmatprep.subr.mxu0 0.0
        %282 = vmatpush1.msra.mxu0 0.0
        %283 = vmatprep.subr.mxu0 0.0
        %284 = vmatpush1.msra.mxu0 %v251
        %285 = vmatprep.subr.mxu0 0.0
        %286 = vmatpush2.msra.mxu0 0.0
        %287 = vmatprep.subr.mxu0 0.0
        %288 = vmatpush2.msra.mxu0 0.0
        %289 = vmatprep.subr.mxu0 0.0
        %290 = vmatpush2.msra.mxu0 0.0
        %291 = vmatprep.subr.mxu0 0.0
        %292 = vmatpush2.msra.mxu0 0.0
        %293 = vmatprep.subr.mxu0 0.0
        %294 = vmatpush2.msra.mxu0 0.0
        %295 = vmatprep.subr.mxu0 0.0
        %296 = vmatpush2.msra.mxu0 0.0
        %297 = vmatprep.subr.mxu0 0.0
        %298 = vmatpush2.msra.mxu0 0.0
        %299 = vmatprep.subr.mxu0 0.0
        %300 = vmatpush2.msra.mxu0 0.0
        %301 = vmatprep.subr.mxu0 0.0
        %302 = vmatpush2.msra.mxu0 0.0
        %303 = vmatprep.subr.mxu0 0.0
        %304 = vmatpush2.msra.mxu0 0.0
        %305 = vmatprep.subr.mxu0 0.0
        %306 = vmatpush2.msra.mxu0 0.0
        %307 = vmatprep.subr.mxu0 0.0
        %308 = vmatpush2.msra.mxu0 0.0
        %309 = vmatprep.subr.mxu0 0.0
        %310 = vmatpush2.msra.mxu0 0.0
        %311 = vmatprep.subr.mxu0 0.0
        %312 = vmatpush2.msra.mxu0 0.0
        %313 = vmatprep.subr.mxu0 0.0
        %314 = vmatpush2.msra.mxu0 0.0
        %315 = vmatprep.subr.mxu0 0.0
        %316 = vmatpush2.msra.mxu0 0.0
        %317 = vmatprep.mubr.f32.mxu0 0.0
        %318 = vmatmul.mubr.f32.gmra.mxu0 %v247
        %v319 = vpop.f32.mrf.mxu0
        %v320 = vadd.f32 %v243, %v319
        %v321 = vpop.f32.mrf.mxu0
        %322 = vdwg.mxu0
        %v323 = vmax.f32 %v320, 0.0
        %324 = vst [vmem:[%s220] sm:$0xff] %v323
        %s325 = sand.u32 %s128, 1
        %s326 = scalar_lea.sflag [#allocation3], %s325
        %s327 = sand.u32 %s128, 1
        %s328 = smul.addr %s327, 8
        %s329 = scalar_lea.vmem [#allocation2], %s328
        // Predicated region
        $region33: #{tpu_custom_call.1} parent=31 // pred_check
          %p330 = pneg %p138
        $region34: #{tpu_custom_call.1} parent=31 // pred_check_branch
          %332 = sbr.rel (%p330) target = $region36
        $region35: #{tpu_custom_call.1} parent=31 // pred_region
          %s334 = ssub.s32 128, 128
          %335 = vsyncadd %s326, %s334
          %s336 = smul.addr %s23, 2
          %s337 = sadd.s32 %s24, %s336
          %s338 = smul.addr %s22, 2
          %s339 = sadd.s32 %s337, %s338
          %s340 = smul.addr %s339, 128
          %s341 = scalar_lea.hbm %s3, %s340
          %s343 = sshll.u32 %s329, 4
          %s344 = int_to_ptr.vmem [resolvable:$true] %s343
          %346 = dma.vmem_to_hbm [thread:$0]  %s344, 128, %s341, %s326
        $region36: #{tpu_custom_call.1} parent=31 // pred_fallthru
          _
      $region32: #{tpu_custom_call.1} parent=5 // pred_fallthru
        _
      %p347 = scmp.le.s32.totalorder 2, %s12
      // Predicated region
      $region37: #{tpu_custom_call.1} parent=5 // pred_check
        %p348 = pneg %p347
      $region38: #{tpu_custom_call.1} parent=5 // pred_check_branch
        %350 = sbr.rel (%p348) target = $region40
      $region39: #{tpu_custom_call.1} parent=5 // pred_region
        %s351 = ssub.s32 %s12, 2
        // Predicated region
        $region41: #{tpu_custom_call.1} parent=39 // pred_check
          %p352 = pneg %p144
        $region42: #{tpu_custom_call.1} parent=39 // pred_check_branch
          %354 = sbr.rel (%p352) target = $region44
        $region43: #{tpu_custom_call.1} parent=39 // pred_region
          %s355 = sand.u32 %s129, 1
          %s356 = scalar_lea.sflag [#allocation3], %s355
          %s357 = sand.u32 %s129, 1
          %s358 = smul.addr %s357, 8
          %s359 = scalar_lea.vmem [#allocation2], %s358
          %360 = dma.done %s356, 128
        $region44: #{tpu_custom_call.1} parent=39 // pred_fallthru
          _
      $region40: #{tpu_custom_call.1} parent=5 // pred_fallthru
        _
    $region6: #{tpu_custom_call.1} parent=1 // loop_footer
      %s16 = sadd.s32 1, %s12
    $region7: #{tpu_custom_call.1} parent=1 // loop_footer_branch
      %11 = sbr.rel target = $region3
    $region8: #{tpu_custom_call.1} parent=1 // loop_exit
      _
    %361 = vsyncpa [#allocation3], 1
    %s362 = scalar_lea.sflag [#allocation3], 1
    %363 = vsyncpa %s362, 1

</llo_original>
